<compile_context>
chip_gen: v7x
topology: tpu7x:2x2x1
jax: 0.10.0
libtpu: 0.0.40
codegen_flags: <defaults>
</compile_context>

<pallas_src>
import functools

import jax
import jax.numpy as jnp
from jax.experimental import pallas as pl
from jax.experimental.pallas import tpu as pltpu

_LANE = 128


def _globaladj_kernel(adj_ref, scale_ref, *refs, with_adj_t):
    """Processes one (b_blk, t, N) row tile.

    adj_ref:    (b_blk, t, N)  input tile
    scale_ref:  (1, N)         shared scale vector
    adj_out:    (b_blk, t, N)  scaled adjacency tile
    adj_t_out:  (b_blk, N, t)  optional transposed tile (block placed at (b, 0, row_tile))
    colsum_out: (b_blk, 1, N)  f32 column sums of this row group (resident block, written once)
    rowsum_out: (b_blk, 1, t)  f32 row sums for the t rows of this tile
    acc:        (b_blk, 1, N)  f32 scratch accumulator for the column sums
    """
    if with_adj_t:
        adj_out, adj_t_out, colsum_out, rowsum_out, acc = refs
    else:
        adj_out, colsum_out, rowsum_out, acc = refs
        adj_t_out = None

    i = pl.program_id(2)
    n_inner = pl.num_programs(2)

    scaled = adj_ref[...] * scale_ref[...][None]                  # (b_blk, t, N)
    adj_out[...] = scaled.astype(adj_out.dtype)
    if adj_t_out is not None:
        adj_t_out[...] = jnp.swapaxes(scaled, -1, -2).astype(adj_t_out.dtype)

    sf32 = scaled.astype(jnp.float32)

    # In-degree row sums are complete within this tile; computed straight from `scaled`
    # (no dependence on the transpose).
    rowsum_out[...] = jnp.sum(sf32, axis=-1)[:, None, :]          # (b_blk, 1, t)

    # Out-degree column sums are partial across the inner row-tile axis: accumulate in f32
    # scratch and write the resident output block once, on the last inner step.
    partial = jnp.sum(sf32, axis=1, keepdims=True)                # (b_blk, 1, N)

    @pl.when(i == 0)
    def _():
        acc[...] = jnp.zeros_like(acc)

    acc[...] += partial

    @pl.when(i == n_inner - 1)
    def _():
        colsum_out[...] = acc[...]


def _vmem_budget_bytes():
    """Half of physical VMEM: ~64 MiB on v5e/v6e (128-MiB parts), ~32 MiB on v7x (64 MiB)."""
    try:
        cap = int(pltpu.get_tpu_info().vmem_capacity_bytes)
    except Exception:
        cap = 64 * 1024 * 1024          # assume the smallest generation (v7x) if the query fails
    return max(16 * 1024 * 1024, min(cap // 2, 64 * 1024 * 1024))


def _largest_divisor_leq(n, cap):
    cap = int(max(1, min(n, cap)))
    for d in range(cap, 0, -1):
        if n % d == 0:
            return d
    return 1


def _choose_tiles(B, n_pad, itemsize, n_big, budget):
    """Pick (b_blk, row_tile): ~1-4 MiB per big block, double-buffered footprint within budget."""
    cap_bytes = budget // (2 * (n_big + 1))        # n_big big streams, x2 buffers, +1 slack
    target_bytes = min(4 * 1024 * 1024, cap_bytes)

    m = n_pad // _LANE                             # row tiles are multiples of 128 rows
    bytes_per_rowblock = _LANE * n_pad * itemsize
    d = _largest_divisor_leq(m, max(1, target_bytes // bytes_per_rowblock))
    t = _LANE * d

    b_blk = 1
    if t == n_pad and B > 1:
        # A whole batch element fits in one block: pack several per step, but keep at least
        # two blocks on the (parallel) batch axis so megacore chips can split it.
        per_batch = n_pad * n_pad * itemsize
        b_blk = _largest_divisor_leq(B, min(max(1, target_bytes // per_batch), B // 2))
    return b_blk, t


def _assemble(adj, adj_t, out_deg_inv, in_deg_inv, out_dtype, dense_degree):
    out_deg_inv = out_deg_inv.astype(out_dtype)
    in_deg_inv = in_deg_inv.astype(out_dtype)
    if dense_degree:
        # Dense diagonal matrices, exactly like the PyTorch module (eye * vector).  If the
        # consumer only multiplies by these diagonals, pass dense_degree=False and fuse the
        # (B,1,N) vectors instead — it removes 2*B*N^2 of ~all-zero HBM writes.
        eye = jnp.eye(adj.shape[-1], dtype=out_dtype)[None]
        out_degree = eye * out_deg_inv
        in_degree = eye * in_deg_inv
    else:
        out_degree, in_degree = out_deg_inv, in_deg_inv
    return {"adj": adj, "adj_t": adj_t, "out_degree": out_degree, "in_degree": in_degree}


def global_adj_forward(adj_apt, scale_message, *, materialize_adj_t=False,
                       dense_degree=True, force_row_tile=None):
    B, N, N2 = adj_apt.shape
    assert N == N2, "adj_apt must be [B, N, N]"
    out_dtype = jnp.result_type(adj_apt.dtype, scale_message.dtype)

    if N < _LANE:
        # Module-sized small graphs (e.g. N=16): output lane width < 128 would force masked
        # partial stores and kernel/grid overhead dominates -- plain XLA fuses this fine.
        adj = (adj_apt * scale_message).astype(out_dtype)
        adj_t = jnp.swapaxes(adj, -1, -2)
        out_deg_inv = jnp.sum(adj, axis=1, keepdims=True) ** -1
        in_deg_inv = jnp.sum(adj_t, axis=1, keepdims=True) ** -1
        return _assemble(adj, adj_t, out_deg_inv, in_deg_inv, out_dtype, dense_degree)

    # Pad N to a lane multiple; zero padding leaves the real row/column sums unchanged.
    # TODO(synk): use pl.BoundedSlice row tiles instead of pad+slice copies for ragged N.
    n_pad = ((N + _LANE - 1) // _LANE) * _LANE
    if n_pad != N:
        p = n_pad - N
        adj_in = jnp.pad(adj_apt, ((0, 0), (0, p), (0, p)))
        scale_in = jnp.pad(scale_message, ((0, 0), (0, p)))
    else:
        adj_in, scale_in = adj_apt, scale_message

    itemsize = jnp.dtype(out_dtype).itemsize
    n_big = 3 if materialize_adj_t else 2          # (b_blk, t, n_pad)-sized streams per step
    budget = _vmem_budget_bytes()

    if force_row_tile is not None:
        assert force_row_tile % _LANE == 0 and n_pad % force_row_tile == 0
        b_blk, t = 1, force_row_tile
    else:
        b_blk, t = _choose_tiles(B, n_pad, itemsize, n_big, budget)

    n_b = B // b_blk
    n_rows = n_pad // t
    # If the batch axis has only one block, split the row tiles into two parallel groups so
    # both TensorCores of a v7x chip stay busy; per-group column sums are reduced outside.
    # TODO(synk): generalize the outer split to odd row-tile counts.
    n_outer = 2 if (n_b == 1 and n_rows >= 2 and n_rows % 2 == 0) else 1
    n_inner = n_rows // n_outer
    assert b_blk == 1 or (n_outer == 1 and n_inner == 1)

    grid = (n_b, n_outer, n_inner)

    def adj_map(b, o, i):
        return (b, o * n_inner + i, 0)

    in_specs = [
        pl.BlockSpec((b_blk, t, n_pad), adj_map),                       # adj_apt row tile
        pl.BlockSpec((1, n_pad), lambda b, o, i: (0, 0)),               # shared scale vector
    ]
    out_specs = [pl.BlockSpec((b_blk, t, n_pad), adj_map)]              # adj
    out_shapes = [jax.ShapeDtypeStruct((B, n_pad, n_pad), out_dtype)]
    if materialize_adj_t:
        # _choose_tiles picks t >= 256 whenever it fits, keeping each strided adj_t burst >= 1 KiB.
        out_specs.append(
            pl.BlockSpec((b_blk, n_pad, t), lambda b, o, i: (b, 0, o * n_inner + i)))
        out_shapes.append(jax.ShapeDtypeStruct((B, n_pad, n_pad), out_dtype))
    out_specs += [
        pl.BlockSpec((b_blk, 1, n_pad), lambda b, o, i: (b * n_outer + o, 0, 0)),  # col sums
        pl.BlockSpec((b_blk, 1, t), lambda b, o, i: (b, 0, o * n_inner + i)),      # row sums
    ]
    out_shapes += [
        jax.ShapeDtypeStruct((B * n_outer, 1, n_pad), jnp.float32),
        jax.ShapeDtypeStruct((B, 1, n_pad), jnp.float32),
    ]

    block_bytes = b_blk * t * n_pad * itemsize
    vmem_limit = int(max(budget, 2 * (n_big + 1) * block_bytes))

    results = pl.pallas_call(
        functools.partial(_globaladj_kernel, with_adj_t=materialize_adj_t),
        grid=grid,
        in_specs=in_specs,
        out_specs=tuple(out_specs),
        out_shape=tuple(out_shapes),
        scratch_shapes=[pltpu.VMEM((b_blk, 1, n_pad), jnp.float32)],
        compiler_params=pltpu.CompilerParams(
            dimension_semantics=("parallel", "parallel", "arbitrary"),
            vmem_limit_bytes=vmem_limit,
        ),
    )(adj_in, scale_in)

    if materialize_adj_t:
        adj_full, adj_t_full, colsum_part, rowsum = results
    else:
        adj_full, colsum_part, rowsum = results
        adj_t_full = None

    adj = adj_full[:, :N, :N] if n_pad != N else adj_full
    if adj_t_full is not None:
        adj_t = adj_t_full[:, :N, :N] if n_pad != N else adj_t_full
    else:
        # Lazy transpose: fuses into downstream consumers under jit.  Pass
        # materialize_adj_t=True if a standalone dense adj_t in HBM is required.
        adj_t = jnp.swapaxes(adj, -1, -2)

    colsum = colsum_part.reshape(B, n_outer, n_pad).sum(axis=1)         # (B, n_pad) f32
    out_deg_inv = (1.0 / colsum)[:, None, :N]
    in_deg_inv = (1.0 / rowsum)[:, :, :N]
    return _assemble(adj, adj_t, out_deg_inv, in_deg_inv, out_dtype, dense_degree)


def global_adj_reference(adj_apt, scale_message):
    N = adj_apt.shape[-1]
    adj = adj_apt * scale_message
    adj_t = jnp.swapaxes(adj, -1, -2)
    eye = jnp.eye(N, dtype=adj.dtype)
    out_degree = eye * (jnp.sum(adj, axis=1, keepdims=True) ** -1)
    in_degree = eye * (jnp.sum(adj_t, axis=1, keepdims=True) ** -1)
    return {"adj": adj, "adj_t": adj_t, "out_degree": out_degree, "in_degree": in_degree}


if __name__ == "__main__":
    key = jax.random.PRNGKey(0)
    configs = [
        # (batch, num_nodes, forward kwargs)
        (2, 16, {}),                                   # module-sized graph -> fused XLA path
        (2, 128, {}),                                  # single-tile Pallas path
        (1, 256, dict(force_row_tile=128)),            # B==1: parallel row-group split (v7x 2 TCs)
        (2, 384, dict(force_row_tile=128,              # multi-tile f32 accumulation +
                      materialize_adj_t=True)),        #   in-kernel transposed adj_t write
        (2, 192, {}),                                  # N not a multiple of 128 -> padded path
    ]
    for batch, num_nodes, kw in configs:
        key, k_adj, k_scale = jax.random.split(key, 3)
        # The module inits scale_message to zeros (degrees would be inf/NaN in torch too);
        # strictly positive values here keep the numerical check finite.
        scale_message = jax.random.uniform(
            k_scale, (1, num_nodes), jnp.float32, minval=0.5, maxval=1.5)
        adj_apt = jax.random.uniform(
            k_adj, (batch, num_nodes, num_nodes), jnp.float32, minval=0.1, maxval=1.0)

        out = jax.block_until_ready(global_adj_forward(adj_apt, scale_message, **kw))
        ref = global_adj_reference(adj_apt, scale_message)
        for name in ("adj", "adj_t", "out_degree", "in_degree"):
            assert jnp.allclose(out[name], ref[name], rtol=1e-5, atol=1e-5), (
                name, batch, num_nodes)

    print("KERNEL_OK")
</pallas_src>

<mosaic_0001>
module attributes {stable_mosaic.version = 11 : i64} {
  func.func @_globaladj_kernel(%arg0: i32, %arg1: i32, %arg2: i32, %arg3: memref<1x128x128xf32, #tpu.memory_space<vmem>>, %arg4: memref<1x128xf32, #tpu.memory_space<vmem>>, %arg5: memref<1x128x128xf32, #tpu.memory_space<vmem>>, %arg6: memref<1x1x128xf32, #tpu.memory_space<vmem>>, %arg7: memref<1x1x128xf32, #tpu.memory_space<vmem>>, %arg8: memref<1x1x128xf32, #tpu.memory_space<vmem>>) attributes {dimension_semantics = [#tpu.dimension_semantics<parallel>, #tpu.dimension_semantics<parallel>, #tpu.dimension_semantics<arbitrary>], iteration_bounds = array<i64: 2, 1, 1>, scalar_prefetch = 0 : i64, scratch_operands = 1 : i64, tpu.core_type = #tpu.core_type<tc>, window_params = [{transform_indices = @transform_0, window_bounds = array<i64: 1, 128, 128>}, {pipeline_mode = #tpu.pipeline_mode<synchronous>, transform_indices = @transform_1, window_bounds = array<i64: 1, 128>}, {transform_indices = @transform_2, window_bounds = array<i64: 1, 128, 128>}, {transform_indices = @transform_3, window_bounds = array<i64: 1, 1, 128>}, {transform_indices = @transform_4, window_bounds = array<i64: 1, 1, 128>}]} {
    %c0 = arith.constant 0 : index
    %c0_0 = arith.constant 0 : index
    %c0_1 = arith.constant 0 : index
    %0 = vector.load %arg3[%c0, %c0_0, %c0_1] : memref<1x128x128xf32, #tpu.memory_space<vmem>>, vector<1x128x128xf32>
    %c0_2 = arith.constant 0 : index
    %c0_3 = arith.constant 0 : index
    %1 = vector.load %arg4[%c0_2, %c0_3] : memref<1x128xf32, #tpu.memory_space<vmem>>, vector<1x128xf32>
    %2 = vector.shape_cast %1 : vector<1x128xf32> to vector<1x1x128xf32>
    %3 = vector.broadcast %2 : vector<1x1x128xf32> to vector<1x128x128xf32>
    %4 = arith.mulf %0, %3 : vector<1x128x128xf32>
    %c0_4 = arith.constant 0 : index
    %c0_5 = arith.constant 0 : index
    %c0_6 = arith.constant 0 : index
    %5 = vector.load %arg5[%c0_4, %c0_5, %c0_6] : memref<1x128x128xf32, #tpu.memory_space<vmem>>, vector<1x128x128xf32>
    tpu.vector_store %arg5[%c0_4, %c0_5, %c0_6], %4 {strides = array<i32>} : memref<1x128x128xf32, #tpu.memory_space<vmem>>, vector<1x128x128xf32>,
    %cst = arith.constant dense<0.000000e+00> : vector<1x128xf32>
    %6 = vector.multi_reduction <add>, %4, %cst [2] : vector<1x128x128xf32> to vector<1x128xf32>
    %7 = vector.shape_cast %6 : vector<1x128xf32> to vector<1x1x128xf32>
    %c0_7 = arith.constant 0 : index
    %c0_8 = arith.constant 0 : index
    %c0_9 = arith.constant 0 : index
    %8 = vector.load %arg7[%c0_7, %c0_8, %c0_9] : memref<1x1x128xf32, #tpu.memory_space<vmem>>, vector<1x1x128xf32>
    tpu.vector_store %arg7[%c0_7, %c0_8, %c0_9], %7 {strides = array<i32>} : memref<1x1x128xf32, #tpu.memory_space<vmem>>, vector<1x1x128xf32>,
    %cst_10 = arith.constant dense<0.000000e+00> : vector<1x128xf32>
    %9 = vector.multi_reduction <add>, %4, %cst_10 [1] : vector<1x128x128xf32> to vector<1x128xf32>
    %10 = vector.shape_cast %9 : vector<1x128xf32> to vector<1x1x128xf32>
    %c0_i32 = arith.constant 0 : i32
    %11 = arith.cmpi eq, %arg2, %c0_i32 : i32
    %12 = arith.extui %11 : i1 to i32
    %c0_i32_11 = arith.constant 0 : i32
    %13 = arith.cmpi ne, %12, %c0_i32_11 : i32
    scf.if %13 {
      %cst_20 = arith.constant 0.000000e+00 : f32
      %20 = vector.broadcast %cst_20 : f32 to vector<1x1x128xf32>
      %c0_21 = arith.constant 0 : index
      %c0_22 = arith.constant 0 : index
      %c0_23 = arith.constant 0 : index
      %21 = vector.load %arg8[%c0_21, %c0_22, %c0_23] : memref<1x1x128xf32, #tpu.memory_space<vmem>>, vector<1x1x128xf32>
      tpu.vector_store %arg8[%c0_21, %c0_22, %c0_23], %20 {strides = array<i32>} : memref<1x1x128xf32, #tpu.memory_space<vmem>>, vector<1x1x128xf32>,
    } else {
    }
    %c0_12 = arith.constant 0 : index
    %c0_13 = arith.constant 0 : index
    %c0_14 = arith.constant 0 : index
    %14 = vector.load %arg8[%c0_12, %c0_13, %c0_14] : memref<1x1x128xf32, #tpu.memory_space<vmem>>, vector<1x1x128xf32>
    %15 = arith.addf %14, %10 : vector<1x1x128xf32>
    %c0_15 = arith.constant 0 : index
    %c0_16 = arith.constant 0 : index
    %c0_17 = arith.constant 0 : index
    %16 = vector.load %arg8[%c0_15, %c0_16, %c0_17] : memref<1x1x128xf32, #tpu.memory_space<vmem>>, vector<1x1x128xf32>
    tpu.vector_store %arg8[%c0_15, %c0_16, %c0_17], %15 {strides = array<i32>} : memref<1x1x128xf32, #tpu.memory_space<vmem>>, vector<1x1x128xf32>,
    %c0_i32_18 = arith.constant 0 : i32
    %17 = arith.cmpi eq, %arg2, %c0_i32_18 : i32
    %18 = arith.extui %17 : i1 to i32
    %c0_i32_19 = arith.constant 0 : i32
    %19 = arith.cmpi ne, %18, %c0_i32_19 : i32
    scf.if %19 {
      %c0_20 = arith.constant 0 : index
      %c0_21 = arith.constant 0 : index
      %c0_22 = arith.constant 0 : index
      %20 = vector.load %arg8[%c0_20, %c0_21, %c0_22] : memref<1x1x128xf32, #tpu.memory_space<vmem>>, vector<1x1x128xf32>
      %c0_23 = arith.constant 0 : index
      %c0_24 = arith.constant 0 : index
      %c0_25 = arith.constant 0 : index
      %21 = vector.load %arg6[%c0_23, %c0_24, %c0_25] : memref<1x1x128xf32, #tpu.memory_space<vmem>>, vector<1x1x128xf32>
      tpu.vector_store %arg6[%c0_23, %c0_24, %c0_25], %20 {strides = array<i32>} : memref<1x1x128xf32, #tpu.memory_space<vmem>>, vector<1x1x128xf32>,
    } else {
    }
    return
  }
  func.func @transform_0(%arg0: i32, %arg1: i32, %arg2: i32) -> (i32, i32, i32) {
    %c1_i32 = arith.constant 1 : i32
    %0 = arith.muli %arg1, %c1_i32 : i32
    %1 = arith.addi %0, %arg2 : i32
    %c0_i32 = arith.constant 0 : i32
    %c0_i32_0 = arith.constant 0 : i32
    return %arg0, %1, %c0_i32 : i32, i32, i32
  }
  func.func @transform_1(%arg0: i32, %arg1: i32, %arg2: i32) -> (i32, i32) {
    %c0_i32 = arith.constant 0 : i32
    %c0_i32_0 = arith.constant 0 : i32
    %c0_i32_1 = arith.constant 0 : i32
    return %c0_i32, %c0_i32_0 : i32, i32
  }
  func.func @transform_2(%arg0: i32, %arg1: i32, %arg2: i32) -> (i32, i32, i32) {
    %c1_i32 = arith.constant 1 : i32
    %0 = arith.muli %arg1, %c1_i32 : i32
    %1 = arith.addi %0, %arg2 : i32
    %c0_i32 = arith.constant 0 : i32
    %c0_i32_0 = arith.constant 0 : i32
    return %arg0, %1, %c0_i32 : i32, i32, i32
  }
  func.func @transform_3(%arg0: i32, %arg1: i32, %arg2: i32) -> (i32, i32, i32) {
    %c1_i32 = arith.constant 1 : i32
    %0 = arith.muli %arg0, %c1_i32 : i32
    %1 = arith.addi %0, %arg1 : i32
    %c0_i32 = arith.constant 0 : i32
    %c0_i32_0 = arith.constant 0 : i32
    %c0_i32_1 = arith.constant 0 : i32
    return %1, %c0_i32, %c0_i32_0 : i32, i32, i32
  }
  func.func @transform_4(%arg0: i32, %arg1: i32, %arg2: i32) -> (i32, i32, i32) {
    %c1_i32 = arith.constant 1 : i32
    %0 = arith.muli %arg1, %c1_i32 : i32
    %1 = arith.addi %0, %arg2 : i32
    %c0_i32 = arith.constant 0 : i32
    %c0_i32_0 = arith.constant 0 : i32
    return %arg0, %c0_i32, %1 : i32, i32, i32
  }
}

</mosaic_0001>

<llo_original>
// kernel: tpu_custom_call.1
$region0: #{tpu_custom_call.1}
  #allocation0 [shape = 'u32[]', space=smem, size = 0x4, offset = 0x4, fixed_abs, tag = 'smem constant byte address 0x4 - core index']
  #allocation1 [shape = 'u32[144,128]{1,0:T(1,128)}', space=vmem, size = 0x12000, scoped, tag = 'internal scratch']
  #allocation2 [shape = 'f32[1,1,128]{2,1,0:T(1,128)}', space=vmem, size = 0x200, scoped, tag = 'scratch operand']
  %s0 = inlined_call_operand.hbm [shape: f32[2,128,128], index: 0, kind: input, shape index: {}]
  %s1 = inlined_call_operand.vmem [shape: f32[1,128], index: 1, kind: input, shape index: {}]
  %s2 = inlined_call_operand.hbm [shape: f32[2,128,128], index: 2, kind: output, shape index: {0}]
  %s3 = inlined_call_operand.hbm [shape: f32[2,1,128], index: 3, kind: output, shape index: {1}]
  %s4 = inlined_call_operand.hbm [shape: f32[2,1,128], index: 4, kind: output, shape index: {2}]
  %5 = xla_tuple %s2, %s3, %s4
  %s6 = sld [smem:[#allocation0]]
  $region69: #{tpu_custom_call.1} parent=0
    _
  %s8 = ssub.s32 1, %s6
  %s9 = scalar_select 0, %s8, %s6
  $region1: #{tpu_custom_call.1} parent=0
    #allocation3 [shape = 'u8[131072]{0}', space=vmem, size = 0x20000, scoped, tag = 'input window, operand 0']
    #allocation4 [shape = 's32[2]{0}', space=sflag, size = 0x8, scoped, tag = 'scoped memory for tpu_custom_call.1']
    #allocation5 [shape = 's32[2]{0}', space=sflag, size = 0x8, scoped, tag = 'scoped memory for tpu_custom_call.1']
    #allocation6 [shape = 'u8[131072]{0}', space=vmem, size = 0x20000, scoped, tag = 'output window, operand 0']
    #allocation7 [shape = 'u8[1024]{0}', space=vmem, size = 0x400, scoped, tag = 'output window, operand 1']
    #allocation8 [shape = 's32[2]{0}', space=sflag, size = 0x8, scoped, tag = 'scoped memory for tpu_custom_call.1']
    #allocation9 [shape = 'u8[1024]{0}', space=vmem, size = 0x400, scoped, tag = 'output window, operand 2']
    %10 = vsyncpa [#allocation4], 0
    %s11 = scalar_lea.sflag [#allocation4], 1
    %12 = vsyncpa %s11, 0
    %13 = vsyncpa [#allocation5], 0
    %s14 = scalar_lea.sflag [#allocation5], 1
    %15 = vsyncpa %s14, 0
    %16 = vsyncpa [#allocation8], 0
    %s17 = scalar_lea.sflag [#allocation8], 1
    %18 = vsyncpa %s17, 0
    loop: start=0, step=1, limit=4
    $region2: #{tpu_custom_call.1} parent=1 // loop_pre_header
      _
    $region3: #{tpu_custom_call.1} parent=1 // loop_header
      %s20 = sphi 0, %s24
      %p21 = scmp.ge.s32.totalorder %s20, 4
      %s27 = sphi 0, %s46
      %s28 = sphi 0, %s42
      %s29 = sphi 0, %s38
      %s30 = sphi 0, %s27
      %s31 = sphi 0, %s28
      %s32 = sphi 0, %s29
      %s33 = sphi 0, %s30
      %s34 = sphi 0, %s31
      %s35 = sphi 0, %s32
      %s53 = sphi 0, %s55
      %s56 = sphi 0, %s53
      %s57 = sphi 0, %s56
      %s73 = sphi 0, %s57
      %s77 = sphi 0, %s77
      %s79 = sphi 0, %s77
      %s80 = sphi 0, %s79
      %s94 = sphi 0, %s80
      %s104 = sphi 0, %s106
      %s107 = sphi 0, %s104
      %s108 = sphi 0, %s107
      %s124 = sphi 0, %s108
      %s132 = sphi 0, %s134
      %s135 = sphi 0, %s132
      %s136 = sphi 0, %s135
      %s152 = sphi 0, %s136
      %s162 = sphi 0, %s164
      %s165 = sphi 0, %s162
      %s166 = sphi 0, %s165
      %s182 = sphi 0, %s166
    $region4: #{tpu_custom_call.1} parent=1 // loop_header_branch
      %23 = sbr.rel (%p21) target = $region8
    $region5: #{tpu_custom_call.1} parent=1 // loop_body
      %s25 = ssub.s32 %s20, 1
      %s26 = ssub.s32 %s20, 2
      %s36 = sadd.s32 1, %s29
      %p37 = scmp.ge.s32.totalorder %s36, 1
      %s38 = scalar_select %p37, 0, %s36
      %s39 = sadd.s32 1, %s28
      %s40 = scalar_select %p37, %s39, %s28
      %p41 = scmp.ge.s32.totalorder %s40, 1
      %s42 = scalar_select %p41, 0, %s40
      %s43 = sadd.s32 1, %s27
      %s44 = scalar_select %p41, %s43, %s27
      %p45 = scmp.ge.s32.totalorder %s44, 2
      %s46 = scalar_select %p45, 0, %s44
      %s47 = sadd.s32 %s28, %s29
      %s48 = sadd.s32 %s42, %s38
      %s49 = ssub.s32 %s27, %s46
      %s50 = ssub.s32 %s47, %s48
      %s51 = sor.u32 %s49, %s50
      %p52 = scmp.eq.s32.totalorder %s51, 0
      %s54 = sadd.s32 %s53, 1
      %s55 = scalar_select %p52, %s53, %s54
      %p58 = pneg %p52
      %p59 = scmp.eq.s32.totalorder %s20, 1
      %p60 = por %p58, %p59
      %p61 = scmp.ne.s32.totalorder %s53, %s56
      %p62 = scmp.eq.s32.totalorder %s20, 0
      %p63 = por %p61, %p62
      %p64 = scmp.ne.s32.totalorder %s53, %s56
      %p65 = scmp.eq.s32.totalorder %s25, 1
      %p66 = por %p64, %p65
      %p67 = scmp.ne.s32.totalorder %s56, %s57
      %p68 = scmp.eq.s32.totalorder %s25, 0
      %p69 = por %p67, %p68
      %p70 = scmp.ne.s32.totalorder %s56, %s57
      %p71 = scmp.eq.s32.totalorder %s26, 1
      %p72 = por %p70, %p71
      %p74 = scmp.ne.s32.totalorder %s57, %s73
      %p75 = scmp.eq.s32.totalorder %s26, 0
      %p76 = por %p74, %p75
      %s78 = sadd.s32 %s77, 1
      %p81 = scmp.eq.s32.totalorder %s20, 1
      %p82 = scmp.ne.s32.totalorder %s77, %s79
      %p83 = scmp.eq.s32.totalorder %s20, 0
      %p84 = por %p82, %p83
      %p85 = scmp.ne.s32.totalorder %s77, %s79
      %p86 = scmp.eq.s32.totalorder %s25, 1
      %p87 = por %p85, %p86
      %p88 = scmp.ne.s32.totalorder %s79, %s80
      %p89 = scmp.eq.s32.totalorder %s25, 0
      %p90 = por %p88, %p89
      %p91 = scmp.ne.s32.totalorder %s79, %s80
      %p92 = scmp.eq.s32.totalorder %s26, 1
      %p93 = por %p91, %p92
      %p95 = scmp.ne.s32.totalorder %s80, %s94
      %p96 = scmp.eq.s32.totalorder %s26, 0
      %p97 = por %p95, %p96
      %s98 = sadd.s32 %s28, %s29
      %s99 = sadd.s32 %s42, %s38
      %s100 = ssub.s32 %s27, %s46
      %s101 = ssub.s32 %s98, %s99
      %s102 = sor.u32 %s100, %s101
      %p103 = scmp.eq.s32.totalorder %s102, 0
      %s105 = sadd.s32 %s104, 1
      %s106 = scalar_select %p103, %s104, %s105
      %p109 = pneg %p103
      %p110 = scmp.eq.s32.totalorder %s20, 1
      %p111 = por %p109, %p110
      %p112 = scmp.ne.s32.totalorder %s104, %s107
      %p113 = scmp.eq.s32.totalorder %s20, 0
      %p114 = por %p112, %p113
      %p115 = scmp.ne.s32.totalorder %s104, %s107
      %p116 = scmp.eq.s32.totalorder %s25, 1
      %p117 = por %p115, %p116
      %p118 = scmp.ne.s32.totalorder %s107, %s108
      %p119 = scmp.eq.s32.totalorder %s25, 0
      %p120 = por %p118, %p119
      %p121 = scmp.ne.s32.totalorder %s107, %s108
      %p122 = scmp.eq.s32.totalorder %s26, 1
      %p123 = por %p121, %p122
      %p125 = scmp.ne.s32.totalorder %s108, %s124
      %p126 = scmp.eq.s32.totalorder %s26, 0
      %p127 = por %p125, %p126
      %s128 = sadd.s32 %s27, %s28
      %s129 = sadd.s32 %s46, %s42
      %s130 = ssub.s32 %s128, %s129
      %p131 = scmp.eq.s32.totalorder %s130, 0
      %s133 = sadd.s32 %s132, 1
      %s134 = scalar_select %p131, %s132, %s133
      %p137 = pneg %p131
      %p138 = scmp.eq.s32.totalorder %s20, 1
      %p139 = por %p137, %p138
      %p140 = scmp.ne.s32.totalorder %s132, %s135
      %p141 = scmp.eq.s32.totalorder %s20, 0
      %p142 = por %p140, %p141
      %p143 = scmp.ne.s32.totalorder %s132, %s135
      %p144 = scmp.eq.s32.totalorder %s25, 1
      %p145 = por %p143, %p144
      %p146 = scmp.ne.s32.totalorder %s135, %s136
      %p147 = scmp.eq.s32.totalorder %s25, 0
      %p148 = por %p146, %p147
      %p149 = scmp.ne.s32.totalorder %s135, %s136
      %p150 = scmp.eq.s32.totalorder %s26, 1
      %p151 = por %p149, %p150
      %p153 = scmp.ne.s32.totalorder %s136, %s152
      %p154 = scmp.eq.s32.totalorder %s26, 0
      %p155 = por %p153, %p154
      %s156 = sadd.s32 %s28, %s29
      %s157 = sadd.s32 %s42, %s38
      %s158 = ssub.s32 %s27, %s46
      %s159 = ssub.s32 %s156, %s157
      %s160 = sor.u32 %s158, %s159
      %p161 = scmp.eq.s32.totalorder %s160, 0
      %s163 = sadd.s32 %s162, 1
      %s164 = scalar_select %p161, %s162, %s163
      %p167 = pneg %p161
      %p168 = scmp.eq.s32.totalorder %s20, 1
      %p169 = por %p167, %p168
      %p170 = scmp.ne.s32.totalorder %s162, %s165
      %p171 = scmp.eq.s32.totalorder %s20, 0
      %p172 = por %p170, %p171
      %p173 = scmp.ne.s32.totalorder %s162, %s165
      %p174 = scmp.eq.s32.totalorder %s25, 1
      %p175 = por %p173, %p174
      %p176 = scmp.ne.s32.totalorder %s165, %s166
      %p177 = scmp.eq.s32.totalorder %s25, 0
      %p178 = por %p176, %p177
      %p179 = scmp.ne.s32.totalorder %s165, %s166
      %p180 = scmp.eq.s32.totalorder %s26, 1
      %p181 = por %p179, %p180
      %p183 = scmp.ne.s32.totalorder %s166, %s182
      %p184 = scmp.eq.s32.totalorder %s26, 0
      %p185 = por %p183, %p184
      %p186 = scmp.le.s32.totalorder 1, %s20
      %p187 = scmp.lt.s32.totalorder %s20, 3
      %p188 = pnand %p186, %p187
      %p189 = pneg %p188
      // Predicated region
      $region9: #{tpu_custom_call.1} parent=5 // pred_check
        _
      $region10: #{tpu_custom_call.1} parent=5 // pred_check_branch
        %191 = sbr.rel (%p188) target = $region12
      $region11: #{tpu_custom_call.1} parent=5 // pred_region
        %s192 = ssub.s32 %s20, 1
        // Predicated region
        $region13: #{tpu_custom_call.1} parent=11 // pred_check
          %p193 = pneg %p90
        $region14: #{tpu_custom_call.1} parent=11 // pred_check_branch
          %195 = sbr.rel (%p193) target = $region16
        $region15: #{tpu_custom_call.1} parent=11 // pred_region
          _
        $region16: #{tpu_custom_call.1} parent=11 // pred_fallthru
          _
      $region12: #{tpu_custom_call.1} parent=5 // pred_fallthru
        _
      %p196 = scmp.lt.s32.totalorder %s20, 2
      // Predicated region
      $region17: #{tpu_custom_call.1} parent=5 // pred_check
        %p197 = pneg %p196
      $region18: #{tpu_custom_call.1} parent=5 // pred_check_branch
        %199 = sbr.rel (%p197) target = $region20
      $region19: #{tpu_custom_call.1} parent=5 // pred_region
        // Predicated region
        $region21: #{tpu_custom_call.1} parent=19 // pred_check
          %p200 = pneg %p63
        $region22: #{tpu_custom_call.1} parent=19 // pred_check_branch
          %202 = sbr.rel (%p200) target = $region24
        $region23: #{tpu_custom_call.1} parent=19 // pred_region
          %s203 = sand.u32 %s53, 1
          %s204 = scalar_lea.sflag [#allocation4], %s203
          %s205 = sand.u32 %s53, 1
          %s206 = smul.addr %s205, 128
          %s207 = scalar_lea.vmem [#allocation3], %s206
          %s208 = sadd.s32 %s28, %s29
          %s209 = smul.u32 16, %s208
          %s211 = ssub.s32 2048, 2048
          %212 = vsyncadd %s204, %s211
          %s213 = smul.addr %s27, 16
          %s214 = sadd.s32 %s209, %s213
          %s215 = smul.addr %s214, 128
          %s216 = scalar_lea.hbm %s0, %s215
          %s217 = sshll.u32 %s207, 4
          %s218 = int_to_ptr.vmem [resolvable:$true] %s217
          %223 = dma.hbm_to_vmem [thread:$0]  %s216, 2048, %s218, %s204, 128, 128, 8
        $region24: #{tpu_custom_call.1} parent=19 // pred_fallthru
          _
      $region20: #{tpu_custom_call.1} parent=5 // pred_fallthru
        _
      %p224 = scmp.le.s32.totalorder 1, %s20
      %p225 = scmp.lt.s32.totalorder %s20, 3
      %p226 = pnand %p224, %p225
      %p227 = pneg %p226
      // Predicated region
      $region25: #{tpu_custom_call.1} parent=5 // pred_check
        _
      $region26: #{tpu_custom_call.1} parent=5 // pred_check_branch
        %229 = sbr.rel (%p226) target = $region28
      $region27: #{tpu_custom_call.1} parent=5 // pred_region
        %s230 = ssub.s32 %s20, 1
        %s231 = sand.u32 %s56, 1
        %s232 = scalar_lea.sflag [#allocation4], %s231
        %s233 = sand.u32 %s56, 1
        %s234 = smul.addr %s233, 128
        %s235 = scalar_lea.vmem [#allocation3], %s234
        // Predicated region
        $region29: #{tpu_custom_call.1} parent=27 // pred_check
          %p236 = pneg %p69
        $region30: #{tpu_custom_call.1} parent=27 // pred_check_branch
          %238 = sbr.rel (%p236) target = $region32
        $region31: #{tpu_custom_call.1} parent=27 // pred_region
          %239 = dma.done %s232, 2048
        $region32: #{tpu_custom_call.1} parent=27 // pred_fallthru
          _
        %s240 = sand.u32 %s56, 1
        %s241 = scalar_lea.sflag [#allocation4], %s240
        %s242 = sand.u32 %s56, 1
        %s243 = smul.addr %s242, 128
        %s244 = scalar_lea.vmem [#allocation3], %s243
        %p245 = pneg %p69
        %p246 = pneg %p66
        %p247 = pneg %p90
        %p248 = pneg %p87
        %p249 = pneg %p120
        %p250 = pneg %p117
        %s251 = sand.u32 %s107, 1
        %s252 = scalar_lea.sflag [#allocation5], %s251
        %s253 = sand.u32 %s107, 1
        %s254 = smul.addr %s253, 128
        %s255 = scalar_lea.vmem [#allocation6], %s254
        %p256 = pneg %p148
        %p257 = pneg %p145
        %s258 = sand.u32 %s25, 1
        %s259 = scalar_lea.sflag [#allocation8], %s258
        %s260 = sand.u32 %s135, 1
        %s261 = scalar_lea.vmem [#allocation7], %s260
        %p262 = pneg %p178
        %p263 = pneg %p175
        %s264 = sand.u32 %s25, 1
        %s265 = scalar_lea.sflag [#allocation8], %s264
        %s266 = sand.u32 %s165, 1
        %s267 = scalar_lea.vmem [#allocation9], %s266
        %s268 = sadd.s32 %s31, %s32
        %s269 = smul.u32 16, %s268
        %s270 = sadd.s32 %s31, %s32
        %s271 = smul.u32 16, %s270
        %s272 = sadd.s32 %s30, %s31
        %s273 = sadd.s32 %s31, %s32
        %v274 = vld [vmem:[%s235] sm:$0xff]
        %v275 = vld [vmem:[%s235 + $0x8] sm:$0xff]
        %v276 = vld [vmem:[%s235 + $0x10] sm:$0xff]
        %v277 = vld [vmem:[%s235 + $0x18] sm:$0xff]
        %v278 = vld [vmem:[%s235 + $0x20] sm:$0xff]
        %v279 = vld [vmem:[%s235 + $0x28] sm:$0xff]
        %v280 = vld [vmem:[%s235 + $0x30] sm:$0xff]
        %v281 = vld [vmem:[%s235 + $0x38] sm:$0xff]
        %v282 = vld [vmem:[%s235 + $0x40] sm:$0xff]
        %v283 = vld [vmem:[%s235 + $0x48] sm:$0xff]
        %v284 = vld [vmem:[%s235 + $0x50] sm:$0xff]
        %v285 = vld [vmem:[%s235 + $0x58] sm:$0xff]
        %v286 = vld [vmem:[%s235 + $0x60] sm:$0xff]
        %v287 = vld [vmem:[%s235 + $0x68] sm:$0xff]
        %v288 = vld [vmem:[%s235 + $0x70] sm:$0xff]
        %v289 = vld [vmem:[%s235 + $0x78] sm:$0xff]
        %v290 = vld [vmem:[%s1] sm:$0x1]
        %v292 = vlaneseq
        %v293 = vshrl.u32 %v292, 7
        %v294 = vsub.s32 0, %v293
        %v295 = vrot.slane %v290, %v294
        %v297 = vmul.f32 %v274, %v295
        %v298 = vmul.f32 %v275, %v295
        %v299 = vmul.f32 %v276, %v295
        %v300 = vmul.f32 %v277, %v295
        %v301 = vmul.f32 %v278, %v295
        %v302 = vmul.f32 %v279, %v295
        %v303 = vmul.f32 %v280, %v295
        %v304 = vmul.f32 %v281, %v295
        %v305 = vmul.f32 %v282, %v295
        %v306 = vmul.f32 %v283, %v295
        %v307 = vmul.f32 %v284, %v295
        %v308 = vmul.f32 %v285, %v295
        %v309 = vmul.f32 %v286, %v295
        %v310 = vmul.f32 %v287, %v295
        %v311 = vmul.f32 %v288, %v295
        %v312 = vmul.f32 %v289, %v295
        %313 = vst [vmem:[%s255] sm:$0xff] %v297
        %314 = vst [vmem:[%s255 + $0x8] sm:$0xff] %v298
        %315 = vst [vmem:[%s255 + $0x10] sm:$0xff] %v299
        %316 = vst [vmem:[%s255 + $0x18] sm:$0xff] %v300
        %317 = vst [vmem:[%s255 + $0x20] sm:$0xff] %v301
        %318 = vst [vmem:[%s255 + $0x28] sm:$0xff] %v302
        %319 = vst [vmem:[%s255 + $0x30] sm:$0xff] %v303
        %320 = vst [vmem:[%s255 + $0x38] sm:$0xff] %v304
        %321 = vst [vmem:[%s255 + $0x40] sm:$0xff] %v305
        %322 = vst [vmem:[%s255 + $0x48] sm:$0xff] %v306
        %323 = vst [vmem:[%s255 + $0x50] sm:$0xff] %v307
        %324 = vst [vmem:[%s255 + $0x58] sm:$0xff] %v308
        %325 = vst [vmem:[%s255 + $0x60] sm:$0xff] %v309
        %326 = vst [vmem:[%s255 + $0x68] sm:$0xff] %v310
        %327 = vst [vmem:[%s255 + $0x70] sm:$0xff] %v311
        %328 = vst [vmem:[%s255 + $0x78] sm:$0xff] %v312
        %329 = vadd.xlane.f32.xlu0 %v297
        %v330 = vpop.xlane.xlu0 %329
        %331 = vadd.xlane.f32.xlu0 %v298
        %v332 = vpop.xlane.xlu0 %331
        %333 = vadd.xlane.f32.xlu0 %v299
        %v334 = vpop.xlane.xlu0 %333
        %335 = vadd.xlane.f32.xlu0 %v300
        %v336 = vpop.xlane.xlu0 %335
        %337 = vadd.xlane.f32.xlu0 %v301
        %v338 = vpop.xlane.xlu0 %337
        %339 = vadd.xlane.f32.xlu0 %v302
        %v340 = vpop.xlane.xlu0 %339
        %341 = vadd.xlane.f32.xlu0 %v303
        %v342 = vpop.xlane.xlu0 %341
        %343 = vadd.xlane.f32.xlu0 %v304
        %v344 = vpop.xlane.xlu0 %343
        %345 = vadd.xlane.f32.xlu0 %v305
        %v346 = vpop.xlane.xlu0 %345
        %347 = vadd.xlane.f32.xlu0 %v306
        %v348 = vpop.xlane.xlu0 %347
        %349 = vadd.xlane.f32.xlu0 %v307
        %v350 = vpop.xlane.xlu0 %349
        %351 = vadd.xlane.f32.xlu0 %v308
        %v352 = vpop.xlane.xlu0 %351
        %353 = vadd.xlane.f32.xlu0 %v309
        %v354 = vpop.xlane.xlu0 %353
        %355 = vadd.xlane.f32.xlu0 %v310
        %v356 = vpop.xlane.xlu0 %355
        %357 = vadd.xlane.f32.xlu0 %v311
        %v358 = vpop.xlane.xlu0 %357
        %359 = vadd.xlane.f32.xlu0 %v312
        %v360 = vpop.xlane.xlu0 %359
        %v377 = vlaneseq
        %v378 = vand.u32 %v377, 127
        %v379 = vlaneseq
        %v380 = vshrl.u32 %v379, 7
        %v381 = vsub.s32 %v378, %v380
        %v382 = vrot.slane %v330, %v381
        %v383 = vadd.s32 %v378, 4294967288
        %v384 = vlaneseq
        %v385 = vshrl.u32 %v384, 7
        %v386 = vsub.s32 %v383, %v385
        %v387 = vrot.slane %v332, %v386
        %vm388 = vcmask 130112
        %v389 = vsel %vm388, %v387, %v382
        %v390 = vadd.s32 %v378, 4294967280
        %v391 = vlaneseq
        %v392 = vshrl.u32 %v391, 7
        %v393 = vsub.s32 %v390, %v392
        %v394 = vrot.slane %v334, %v393
        %vm395 = vcmask 195712
        %v396 = vsel %vm395, %v394, %v389
        %v397 = vadd.s32 %v378, 4294967272
        %v398 = vlaneseq
        %v399 = vshrl.u32 %v398, 7
        %v400 = vsub.s32 %v397, %v399
        %v401 = vrot.slane %v336, %v400
        %vm402 = vcmask 261312
        %v403 = vsel %vm402, %v401, %v396
        %v404 = vadd.s32 %v378, 4294967264
        %v405 = vlaneseq
        %v406 = vshrl.u32 %v405, 7
        %v407 = vsub.s32 %v404, %v406
        %v408 = vrot.slane %v338, %v407
        %vm409 = vcmask 326912
        %v410 = vsel %vm409, %v408, %v403
        %v411 = vadd.s32 %v378, 4294967256
        %v412 = vlaneseq
        %v413 = vshrl.u32 %v412, 7
        %v414 = vsub.s32 %v411, %v413
        %v415 = vrot.slane %v340, %v414
        %vm416 = vcmask 392512
        %v417 = vsel %vm416, %v415, %v410
        %v418 = vadd.s32 %v378, 4294967248
        %v419 = vlaneseq
        %v420 = vshrl.u32 %v419, 7
        %v421 = vsub.s32 %v418, %v420
        %v422 = vrot.slane %v342, %v421
        %vm423 = vcmask 458112
        %v424 = vsel %vm423, %v422, %v417
        %v425 = vadd.s32 %v378, 4294967240
        %v426 = vlaneseq
        %v427 = vshrl.u32 %v426, 7
        %v428 = vsub.s32 %v425, %v427
        %v429 = vrot.slane %v344, %v428
        %vm430 = vcmask 523712
        %v431 = vsel %vm430, %v429, %v424
        %v432 = vadd.s32 %v378, 4294967232
        %v433 = vlaneseq
        %v434 = vshrl.u32 %v433, 7
        %v435 = vsub.s32 %v432, %v434
        %v436 = vrot.slane %v346, %v435
        %vm437 = vcmask 589312
        %v438 = vsel %vm437, %v436, %v431
        %v439 = vadd.s32 %v378, 4294967224
        %v440 = vlaneseq
        %v441 = vshrl.u32 %v440, 7
        %v442 = vsub.s32 %v439, %v441
        %v443 = vrot.slane %v348, %v442
        %vm444 = vcmask 654912
        %v445 = vsel %vm444, %v443, %v438
        %v446 = vadd.s32 %v378, 4294967216
        %v447 = vlaneseq
        %v448 = vshrl.u32 %v447, 7
        %v449 = vsub.s32 %v446, %v448
        %v450 = vrot.slane %v350, %v449
        %vm451 = vcmask 720512
        %v452 = vsel %vm451, %v450, %v445
        %v453 = vadd.s32 %v378, 4294967208
        %v454 = vlaneseq
        %v455 = vshrl.u32 %v454, 7
        %v456 = vsub.s32 %v453, %v455
        %v457 = vrot.slane %v352, %v456
        %vm458 = vcmask 786112
        %v459 = vsel %vm458, %v457, %v452
        %v460 = vadd.s32 %v378, 4294967200
        %v461 = vlaneseq
        %v462 = vshrl.u32 %v461, 7
        %v463 = vsub.s32 %v460, %v462
        %v464 = vrot.slane %v354, %v463
        %vm465 = vcmask 851712
        %v466 = vsel %vm465, %v464, %v459
        %v467 = vadd.s32 %v378, 4294967192
        %v468 = vlaneseq
        %v469 = vshrl.u32 %v468, 7
        %v470 = vsub.s32 %v467, %v469
        %v471 = vrot.slane %v356, %v470
        %vm472 = vcmask 917312
        %v473 = vsel %vm472, %v471, %v466
        %v474 = vadd.s32 %v378, 4294967184
        %v475 = vlaneseq
        %v476 = vshrl.u32 %v475, 7
        %v477 = vsub.s32 %v474, %v476
        %v478 = vrot.slane %v358, %v477
        %vm479 = vcmask 982912
        %v480 = vsel %vm479, %v478, %v473
        %v481 = vadd.s32 %v378, 4294967176
        %v482 = vlaneseq
        %v483 = vshrl.u32 %v482, 7
        %v484 = vsub.s32 %v481, %v483
        %v485 = vrot.slane %v360, %v484
        %vm486 = vcmask 1048512
        %v487 = vsel %vm486, %v485, %v480
        %489 = vst [vmem:[%s267] sm:$0x1] %v487
        %v490 = vadd.f32 %v297, %v298
        %v491 = vadd.f32 %v490, %v299
        %v492 = vadd.f32 %v491, %v300
        %v493 = vadd.f32 %v492, %v301
        %v494 = vadd.f32 %v493, %v302
        %v495 = vadd.f32 %v494, %v303
        %v496 = vadd.f32 %v495, %v304
        %v497 = vadd.f32 %v496, %v305
        %v498 = vadd.f32 %v497, %v306
        %v499 = vadd.f32 %v498, %v307
        %v500 = vadd.f32 %v499, %v308
        %v501 = vadd.f32 %v500, %v309
        %v502 = vadd.f32 %v501, %v310
        %v503 = vadd.f32 %v502, %v311
        %v504 = vadd.f32 %v503, %v312
        %v505 = vrot.slane %v504, 4
        %v506 = vadd.f32 %v504, %v505
        %v507 = vrot.slane %v506, 2
        %v508 = vadd.f32 %v506, %v507
        %v509 = vrot.slane %v508, 1
        %v510 = vadd.f32 %v508, %v509
        %p511 = scmp.eq.s32.totalorder %s32, 0
        // Predicated region
        $region33: #{tpu_custom_call.1} parent=27 // pred_check
          %p512 = pneg %p511
        $region34: #{tpu_custom_call.1} parent=27 // pred_check_branch
          %514 = sbr.rel (%p512) target = $region36
        $region35: #{tpu_custom_call.1} parent=27 // pred_region
          %515 = vst [vmem:[#allocation2] sm:$0x1] 0.0
        $region36: #{tpu_custom_call.1} parent=27 // pred_fallthru
          _
        %v516 = vld [vmem:[#allocation2] sm:$0x1]
        %v517 = vadd.f32 %v516, %v510
        %518 = vst [vmem:[#allocation2] sm:$0x1] %v517
        // Predicated region
        $region37: #{tpu_custom_call.1} parent=27 // pred_check
          %p519 = pneg %p511
        $region38: #{tpu_custom_call.1} parent=27 // pred_check_branch
          %521 = sbr.rel (%p519) target = $region40
        $region39: #{tpu_custom_call.1} parent=27 // pred_region
          %v522 = vld [vmem:[#allocation2] sm:$0x1]
          %523 = vst [vmem:[%s261] sm:$0x1] %v522
        $region40: #{tpu_custom_call.1} parent=27 // pred_fallthru
          _
        %s524 = sand.u32 %s107, 1
        %s525 = scalar_lea.sflag [#allocation5], %s524
        %s526 = sand.u32 %s107, 1
        %s527 = smul.addr %s526, 128
        %s528 = scalar_lea.vmem [#allocation6], %s527
        %s529 = sand.u32 %s25, 1
        %s530 = scalar_lea.sflag [#allocation8], %s529
        %s531 = sand.u32 %s135, 1
        %s532 = scalar_lea.vmem [#allocation7], %s531
        %s533 = sand.u32 %s25, 1
        %s534 = scalar_lea.sflag [#allocation8], %s533
        %s535 = sand.u32 %s165, 1
        %s536 = scalar_lea.vmem [#allocation9], %s535
        // Predicated region
        $region41: #{tpu_custom_call.1} parent=27 // pred_check
          %p537 = pneg %p117
        $region42: #{tpu_custom_call.1} parent=27 // pred_check_branch
          %539 = sbr.rel (%p537) target = $region44
        $region43: #{tpu_custom_call.1} parent=27 // pred_region
          %s540 = sadd.s32 %s31, %s32
          %s541 = smul.u32 16, %s540
          %s543 = ssub.s32 2048, 2048
          %544 = vsyncadd %s525, %s543
          %s545 = smul.addr %s30, 16
          %s546 = sadd.s32 %s541, %s545
          %s547 = smul.addr %s546, 128
          %s548 = scalar_lea.hbm %s2, %s547
          %s549 = sshll.u32 %s528, 4
          %s550 = int_to_ptr.vmem [resolvable:$true] %s549
          %555 = dma.vmem_to_hbm [thread:$0]  %s550, 2048, %s548, %s525, 128, 128, 8
        $region44: #{tpu_custom_call.1} parent=27 // pred_fallthru
          _
        // Predicated region
        $region45: #{tpu_custom_call.1} parent=27 // pred_check
          %p556 = pneg %p145
        $region46: #{tpu_custom_call.1} parent=27 // pred_check_branch
          %558 = sbr.rel (%p556) target = $region48
        $region47: #{tpu_custom_call.1} parent=27 // pred_region
          %s559 = sadd.s32 %s30, %s31
          %s561 = ssub.s32 16, 16
          %562 = vsyncadd %s530, %s561
          %s563 = smul.addr %s559, 16
          %s564 = scalar_lea.hbm %s3, %s563
          %s566 = sshll.u32 %s532, 4
          %s567 = int_to_ptr.vmem [resolvable:$true] %s566
          %569 = dma.vmem_to_hbm [thread:$0]  %s567, 16, %s564, %s530
        $region48: #{tpu_custom_call.1} parent=27 // pred_fallthru
          _
        // Predicated region
        $region49: #{tpu_custom_call.1} parent=27 // pred_check
          %p570 = pneg %p175
        $region50: #{tpu_custom_call.1} parent=27 // pred_check_branch
          %572 = sbr.rel (%p570) target = $region52
        $region51: #{tpu_custom_call.1} parent=27 // pred_region
          %s573 = sadd.s32 %s31, %s32
          %s575 = ssub.s32 16, 16
          %576 = vsyncadd %s534, %s575
          %s577 = sadd.s32 %s573, %s30
          %s578 = smul.addr %s577, 16
          %s579 = scalar_lea.hbm %s4, %s578
          %s581 = sshll.u32 %s536, 4
          %s582 = int_to_ptr.vmem [resolvable:$true] %s581
          %584 = dma.vmem_to_hbm [thread:$0]  %s582, 16, %s579, %s534
        $region52: #{tpu_custom_call.1} parent=27 // pred_fallthru
          _
      $region28: #{tpu_custom_call.1} parent=5 // pred_fallthru
        _
      %p585 = scmp.le.s32.totalorder 2, %s20
      // Predicated region
      $region53: #{tpu_custom_call.1} parent=5 // pred_check
        %p586 = pneg %p585
      $region54: #{tpu_custom_call.1} parent=5 // pred_check_branch
        %588 = sbr.rel (%p586) target = $region56
      $region55: #{tpu_custom_call.1} parent=5 // pred_region
        %s589 = ssub.s32 %s20, 2
        // Predicated region
        $region57: #{tpu_custom_call.1} parent=55 // pred_check
          %p590 = pneg %p123
        $region58: #{tpu_custom_call.1} parent=55 // pred_check_branch
          %592 = sbr.rel (%p590) target = $region60
        $region59: #{tpu_custom_call.1} parent=55 // pred_region
          %s593 = sand.u32 %s108, 1
          %s594 = scalar_lea.sflag [#allocation5], %s593
          %s595 = sand.u32 %s108, 1
          %s596 = smul.addr %s595, 128
          %s597 = scalar_lea.vmem [#allocation6], %s596
          %598 = dma.done %s594, 2048
        $region60: #{tpu_custom_call.1} parent=55 // pred_fallthru
          _
        // Predicated region
        $region61: #{tpu_custom_call.1} parent=55 // pred_check
          %p599 = pneg %p151
        $region62: #{tpu_custom_call.1} parent=55 // pred_check_branch
          %601 = sbr.rel (%p599) target = $region64
        $region63: #{tpu_custom_call.1} parent=55 // pred_region
          %s602 = sand.u32 %s26, 1
          %s603 = scalar_lea.sflag [#allocation8], %s602
          %s604 = sand.u32 %s136, 1
          %s605 = scalar_lea.vmem [#allocation7], %s604
          %606 = dma.done %s603, 16
        $region64: #{tpu_custom_call.1} parent=55 // pred_fallthru
          _
        // Predicated region
        $region65: #{tpu_custom_call.1} parent=55 // pred_check
          %p607 = pneg %p181
        $region66: #{tpu_custom_call.1} parent=55 // pred_check_branch
          %609 = sbr.rel (%p607) target = $region68
        $region67: #{tpu_custom_call.1} parent=55 // pred_region
          %s610 = sand.u32 %s26, 1
          %s611 = scalar_lea.sflag [#allocation8], %s610
          %s612 = sand.u32 %s166, 1
          %s613 = scalar_lea.vmem [#allocation9], %s612
          %614 = dma.done %s611, 16
        $region68: #{tpu_custom_call.1} parent=55 // pred_fallthru
          _
      $region56: #{tpu_custom_call.1} parent=5 // pred_fallthru
        _
    $region6: #{tpu_custom_call.1} parent=1 // loop_footer
      %s24 = sadd.s32 1, %s20
    $region7: #{tpu_custom_call.1} parent=1 // loop_footer_branch
      %19 = sbr.rel target = $region3
    $region8: #{tpu_custom_call.1} parent=1 // loop_exit
      _
    %615 = vsyncpa [#allocation4], 1
    %s616 = scalar_lea.sflag [#allocation4], 1
    %617 = vsyncpa %s616, 1
    %618 = vsyncpa [#allocation5], 1
    %s619 = scalar_lea.sflag [#allocation5], 1
    %620 = vsyncpa %s619, 1
    %621 = vsyncpa [#allocation8], 1
    %s622 = scalar_lea.sflag [#allocation8], 1
    %623 = vsyncpa %s622, 1

</llo_original>
